<compile_context>
chip_gen: v6e
topology: v6e:2x2x1
jax: 0.10.0
libtpu: 0.0.40
codegen_flags: <defaults>
</compile_context>

<pallas_src>
import math
import jax
import jax.numpy as jnp
from jax.experimental import pallas as pl
from jax.experimental.pallas import tpu as pltpu


def time_embedding_kernel(t_ref, freqs_ref, phase_ref, w1_ref, b1_ref, w2_ref, b2_ref, o_ref):
    # t_ref:     (TB, 1)        f32   timesteps tile
    # freqs_ref: (1, ec_p)      f32   [freqs, freqs, 0-pad]
    # phase_ref: (1, ec_p)      f32   [0,..,0, -pi/2,..,-pi/2, -pi/2-pad]
    # w1_ref:    (ec_p, out_p)        first Linear weight, (in, out) layout (maybe bf16)
    # b1_ref:    (1, out_p)     f32
    # w2_ref:    (out_p, out_p)       second Linear weight (maybe bf16)
    # b2_ref:    (1, out_p)     f32
    # o_ref:     (TB, out_p)    f32
    t = t_ref[...]                                        # (TB, 1)

    # Sinusoidal embedding as one phase-shifted cosine (cos(x - pi/2) == sin(x)).
    emb = jnp.cos(t * freqs_ref[...] + phase_ref[...])    # (TB, ec_p) f32

    w_dtype = w1_ref.dtype
    # First Linear: single full-K MXU dot with f32 accumulation.
    h = (jnp.dot(emb.astype(w_dtype), w1_ref[...], preferred_element_type=jnp.float32)
         + b1_ref[...])                                   # (TB, out_p) f32

    # SiLU kept in f32 (v5e VPU/EUP have no bf16 path); sigmoid uses the EUP slot.
    h = h * jax.nn.sigmoid(h)

    # Second Linear.
    out = (jnp.dot(h.astype(w2_ref.dtype), w2_ref[...], preferred_element_type=jnp.float32)
           + b2_ref[...])                                 # (TB, out_p) f32
    o_ref[...] = out.astype(o_ref.dtype)


def time_embedding(timesteps, freqs, w1, b1, w2, b2, *,
                   weight_dtype=jnp.float32, block_b=None):
    """timesteps: (B,); freqs: (embed_c//2,); w1: (embed_c, out_c) [= torch W1.T];
    b1: (out_c,); w2: (out_c, out_c) [= torch W2.T]; b2: (out_c,).
    Returns (B, out_c) float32, matching TimeEmbedding.forward."""
    B = timesteps.shape[0]
    embed_c, out_c = w1.shape
    half = embed_c // 2
    assert freqs.shape == (half,)
    assert w2.shape == (out_c, out_c)

    # --- lane-dense output: pad out_c up to a multiple of 128 ------------------------
    out_p = max(128, ((out_c + 127) // 128) * 128)
    pc = out_p - out_c
    # --- sublane-aligned K: pad embed_c up to a multiple of 8 ------------------------
    ec_p = ((embed_c + 7) // 8) * 8
    pk = ec_p - embed_c

    w1p = jnp.pad(w1, ((0, pk), (0, pc))).astype(weight_dtype)          # (ec_p, out_p)
    b1p = jnp.pad(b1, ((0, pc),)).reshape(1, out_p).astype(jnp.float32)
    w2p = jnp.pad(w2, ((0, pc), (0, pc))).astype(weight_dtype)          # (out_p, out_p)
    b2p = jnp.pad(b2, ((0, pc),)).reshape(1, out_p).astype(jnp.float32)

    # --- single phase-shifted cosine instead of cos/sin + weight split ---------------
    # Padded K columns get freq=0 and phase=-pi/2 -> cos == 0 (and W1 pad rows are 0).
    freqs_full = jnp.concatenate([
        freqs.astype(jnp.float32),
        freqs.astype(jnp.float32),
        jnp.zeros((pk,), jnp.float32),
    ]).reshape(1, ec_p)
    phase = jnp.concatenate([
        jnp.zeros((half,), jnp.float32),
        jnp.full((half + pk,), -0.5 * math.pi, jnp.float32),
    ]).reshape(1, ec_p)

    # --- batch tiling: parallel grid over B (shards across v7x's 2 TCs) --------------
    if block_b is None:
        block_b = min(max(8, ((B + 7) // 8) * 8), 256)
    Bp = ((B + block_b - 1) // block_b) * block_b
    t2d = jnp.pad(timesteps.astype(jnp.float32), ((0, Bp - B),)).reshape(Bp, 1)

    out = pl.pallas_call(
        time_embedding_kernel,
        out_shape=jax.ShapeDtypeStruct((Bp, out_p), jnp.float32),
        grid=(Bp // block_b,),
        in_specs=[
            pl.BlockSpec((block_b, 1), lambda i: (i, 0)),     # timesteps tile
            pl.BlockSpec((1, ec_p), lambda i: (0, 0)),        # freqs (VMEM-resident)
            pl.BlockSpec((1, ec_p), lambda i: (0, 0)),        # phase
            pl.BlockSpec((ec_p, out_p), lambda i: (0, 0)),    # w1
            pl.BlockSpec((1, out_p), lambda i: (0, 0)),       # b1
            pl.BlockSpec((out_p, out_p), lambda i: (0, 0)),   # w2
            pl.BlockSpec((1, out_p), lambda i: (0, 0)),       # b2
        ],
        out_specs=pl.BlockSpec((block_b, out_p), lambda i: (i, 0)),
        compiler_params=pltpu.CompilerParams(dimension_semantics=("parallel",)),
    )(t2d, freqs_full, phase, w1p, b1p, w2p, b2p)

    return out[:B, :out_c]


def reference(timesteps, freqs, w1, b1, w2, b2):
    t_freqs = timesteps[:, None] * freqs[None, :]
    emb = jnp.concatenate([jnp.cos(t_freqs), jnp.sin(t_freqs)], axis=-1)
    h = emb @ w1 + b1
    h = h * jax.nn.sigmoid(h)
    return h @ w2 + b2


if __name__ == "__main__":
    # Small, module-consistent shapes.
    B = 8
    embed_c = 32
    out_c = 32
    max_period = 10000
    half = embed_c // 2

    key = jax.random.PRNGKey(0)
    k_t, k_w1, k_b1, k_w2, k_b2 = jax.random.split(key, 5)

    timesteps = jax.random.uniform(k_t, (B,), jnp.float32, 0.0, 1000.0)

    # freqs buffer: exp(-log(max_period) * linspace(0, 1, half))
    freqs = jnp.exp(-math.log(max_period) * jnp.linspace(0.0, 1.0, half)).astype(jnp.float32)

    lim1 = 1.0 / math.sqrt(embed_c)
    lim2 = 1.0 / math.sqrt(out_c)
    # Weights in (in_features, out_features) layout (== PyTorch weight.T).
    w1 = jax.random.uniform(k_w1, (embed_c, out_c), jnp.float32, -lim1, lim1)
    b1 = jax.random.uniform(k_b1, (out_c,), jnp.float32, -lim1, lim1)
    w2 = jax.random.uniform(k_w2, (out_c, out_c), jnp.float32, -lim2, lim2)
    b2 = jax.random.uniform(k_b2, (out_c,), jnp.float32, -lim2, lim2)

    ref = jax.block_until_ready(reference(timesteps, freqs, w1, b1, w2, b2))

    # f32 parameters (tolerance accounts for the phase-shifted cos at large t*f args).
    out = jax.block_until_ready(time_embedding(timesteps, freqs, w1, b1, w2, b2))
    assert out.shape == (B, out_c)
    assert jnp.allclose(out, ref, atol=1e-3, rtol=1e-3), "f32 mismatch vs. reference"

    # bf16 MXU operands (main DMA lever at production out_c); looser tolerance.
    out_bf16 = jax.block_until_ready(
        time_embedding(timesteps, freqs, w1, b1, w2, b2, weight_dtype=jnp.bfloat16))
    assert jnp.allclose(out_bf16, ref, atol=5e-2, rtol=5e-2), "bf16 mismatch vs. reference"

    print("KERNEL_OK")
</pallas_src>

<mosaic_0001>
module attributes {stable_mosaic.version = 11 : i64} {
  func.func @time_embedding_kernel(%arg0: i32, %arg1: memref<8x1xf32, #tpu.memory_space<vmem>>, %arg2: memref<1x32xf32, #tpu.memory_space<vmem>>, %arg3: memref<1x32xf32, #tpu.memory_space<vmem>>, %arg4: memref<32x128xf32, #tpu.memory_space<vmem>>, %arg5: memref<1x128xf32, #tpu.memory_space<vmem>>, %arg6: memref<128x128xf32, #tpu.memory_space<vmem>>, %arg7: memref<1x128xf32, #tpu.memory_space<vmem>>, %arg8: memref<8x128xf32, #tpu.memory_space<vmem>>) attributes {dimension_semantics = [#tpu.dimension_semantics<parallel>], iteration_bounds = array<i64: 1>, scalar_prefetch = 0 : i64, scratch_operands = 0 : i64, tpu.core_type = #tpu.core_type<tc>, window_params = [{transform_indices = @transform_0, window_bounds = array<i64: 8, 1>}, {pipeline_mode = #tpu.pipeline_mode<synchronous>, transform_indices = @transform_1, window_bounds = array<i64: 1, 32>}, {pipeline_mode = #tpu.pipeline_mode<synchronous>, transform_indices = @transform_2, window_bounds = array<i64: 1, 32>}, {pipeline_mode = #tpu.pipeline_mode<synchronous>, transform_indices = @transform_3, window_bounds = array<i64: 32, 128>}, {pipeline_mode = #tpu.pipeline_mode<synchronous>, transform_indices = @transform_4, window_bounds = array<i64: 1, 128>}, {pipeline_mode = #tpu.pipeline_mode<synchronous>, transform_indices = @transform_5, window_bounds = array<i64: 128, 128>}, {pipeline_mode = #tpu.pipeline_mode<synchronous>, transform_indices = @transform_6, window_bounds = array<i64: 1, 128>}, {transform_indices = @transform_7, window_bounds = array<i64: 8, 128>}]} {
    %c0 = arith.constant 0 : index
    %c0_0 = arith.constant 0 : index
    %0 = vector.load %arg1[%c0, %c0_0] : memref<8x1xf32, #tpu.memory_space<vmem>>, vector<8x1xf32>
    %c0_1 = arith.constant 0 : index
    %c0_2 = arith.constant 0 : index
    %1 = vector.load %arg2[%c0_1, %c0_2] : memref<1x32xf32, #tpu.memory_space<vmem>>, vector<1x32xf32>
    %2 = vector.broadcast %0 : vector<8x1xf32> to vector<8x32xf32>
    %3 = vector.broadcast %1 : vector<1x32xf32> to vector<8x32xf32>
    %4 = arith.mulf %2, %3 : vector<8x32xf32>
    %c0_3 = arith.constant 0 : index
    %c0_4 = arith.constant 0 : index
    %5 = vector.load %arg3[%c0_3, %c0_4] : memref<1x32xf32, #tpu.memory_space<vmem>>, vector<1x32xf32>
    %6 = vector.broadcast %5 : vector<1x32xf32> to vector<8x32xf32>
    %7 = arith.addf %4, %6 : vector<8x32xf32>
    %8 = math.cos %7 : vector<8x32xf32>
    %c0_5 = arith.constant 0 : index
    %c0_6 = arith.constant 0 : index
    %9 = vector.load %arg4[%c0_5, %c0_6] : memref<32x128xf32, #tpu.memory_space<vmem>>, vector<32x128xf32>
    %cst = arith.constant dense<0.000000e+00> : vector<8x128xf32>
    %10 = tpu.matmul %8, %9, %cst {dimension_numbers = #tpu.dot_dimension_numbers<[1], [0], [0], [1], [0, 0, 1, 1], [], []>} : vector<8x32xf32>, vector<32x128xf32>, vector<8x128xf32> -> vector<8x128xf32>
    %c0_7 = arith.constant 0 : index
    %c0_8 = arith.constant 0 : index
    %11 = vector.load %arg5[%c0_7, %c0_8] : memref<1x128xf32, #tpu.memory_space<vmem>>, vector<1x128xf32>
    %12 = vector.broadcast %11 : vector<1x128xf32> to vector<8x128xf32>
    %13 = arith.addf %10, %12 : vector<8x128xf32>
    %14 = arith.negf %13 : vector<8x128xf32>
    %15 = math.exp %14 : vector<8x128xf32>
    %cst_9 = arith.constant 1.000000e+00 : f32
    %16 = vector.broadcast %cst_9 : f32 to vector<8x128xf32>
    %17 = arith.addf %16, %15 : vector<8x128xf32>
    %18 = arith.divf %16, %17 : vector<8x128xf32>
    %19 = arith.mulf %13, %18 : vector<8x128xf32>
    %c0_10 = arith.constant 0 : index
    %c0_11 = arith.constant 0 : index
    %20 = vector.load %arg6[%c0_10, %c0_11] : memref<128x128xf32, #tpu.memory_space<vmem>>, vector<128x128xf32>
    %cst_12 = arith.constant dense<0.000000e+00> : vector<8x128xf32>
    %21 = tpu.matmul %19, %20, %cst_12 {dimension_numbers = #tpu.dot_dimension_numbers<[1], [0], [0], [1], [0, 0, 1, 1], [], []>} : vector<8x128xf32>, vector<128x128xf32>, vector<8x128xf32> -> vector<8x128xf32>
    %c0_13 = arith.constant 0 : index
    %c0_14 = arith.constant 0 : index
    %22 = vector.load %arg7[%c0_13, %c0_14] : memref<1x128xf32, #tpu.memory_space<vmem>>, vector<1x128xf32>
    %23 = vector.broadcast %22 : vector<1x128xf32> to vector<8x128xf32>
    %24 = arith.addf %21, %23 : vector<8x128xf32>
    %c0_15 = arith.constant 0 : index
    %c0_16 = arith.constant 0 : index
    %25 = vector.load %arg8[%c0_15, %c0_16] : memref<8x128xf32, #tpu.memory_space<vmem>>, vector<8x128xf32>
    tpu.vector_store %arg8[%c0_15, %c0_16], %24 {strides = array<i32>} : memref<8x128xf32, #tpu.memory_space<vmem>>, vector<8x128xf32>,
    return
  }
  func.func @transform_0(%arg0: i32) -> (i32, i32) {
    %c0_i32 = arith.constant 0 : i32
    %c0_i32_0 = arith.constant 0 : i32
    return %arg0, %c0_i32 : i32, i32
  }
  func.func @transform_1(%arg0: i32) -> (i32, i32) {
    %c0_i32 = arith.constant 0 : i32
    %c0_i32_0 = arith.constant 0 : i32
    %c0_i32_1 = arith.constant 0 : i32
    return %c0_i32, %c0_i32_0 : i32, i32
  }
  func.func @transform_2(%arg0: i32) -> (i32, i32) {
    %c0_i32 = arith.constant 0 : i32
    %c0_i32_0 = arith.constant 0 : i32
    %c0_i32_1 = arith.constant 0 : i32
    return %c0_i32, %c0_i32_0 : i32, i32
  }
  func.func @transform_3(%arg0: i32) -> (i32, i32) {
    %c0_i32 = arith.constant 0 : i32
    %c0_i32_0 = arith.constant 0 : i32
    %c0_i32_1 = arith.constant 0 : i32
    return %c0_i32, %c0_i32_0 : i32, i32
  }
  func.func @transform_4(%arg0: i32) -> (i32, i32) {
    %c0_i32 = arith.constant 0 : i32
    %c0_i32_0 = arith.constant 0 : i32
    %c0_i32_1 = arith.constant 0 : i32
    return %c0_i32, %c0_i32_0 : i32, i32
  }
  func.func @transform_5(%arg0: i32) -> (i32, i32) {
    %c0_i32 = arith.constant 0 : i32
    %c0_i32_0 = arith.constant 0 : i32
    %c0_i32_1 = arith.constant 0 : i32
    return %c0_i32, %c0_i32_0 : i32, i32
  }
  func.func @transform_6(%arg0: i32) -> (i32, i32) {
    %c0_i32 = arith.constant 0 : i32
    %c0_i32_0 = arith.constant 0 : i32
    %c0_i32_1 = arith.constant 0 : i32
    return %c0_i32, %c0_i32_0 : i32, i32
  }
  func.func @transform_7(%arg0: i32) -> (i32, i32) {
    %c0_i32 = arith.constant 0 : i32
    %c0_i32_0 = arith.constant 0 : i32
    return %arg0, %c0_i32 : i32, i32
  }
}

</mosaic_0001>

<llo_original>
// kernel: tpu_custom_call.1
$region0: #{tpu_custom_call.1}
  #allocation0 [shape = 'u32[]', space=smem, size = 0x4, offset = 0x4, fixed_abs, tag = 'smem constant byte address 0x4 - core index']
  #allocation1 [shape = 'u32[144,128]{1,0:T(1,128)}', space=vmem, size = 0x12000, scoped, tag = 'internal scratch']
  %s0 = inlined_call_operand.vmem [shape: f32[8,1], index: 0, kind: input, shape index: {}]
  %s1 = inlined_call_operand.vmem [shape: f32[1,32], index: 1, kind: input, shape index: {}]
  %s2 = inlined_call_operand.vmem [shape: f32[1,32], index: 2, kind: input, shape index: {}]
  %s3 = inlined_call_operand.hbm [shape: f32[32,128], index: 3, kind: input, shape index: {}]
  %s4 = inlined_call_operand.vmem [shape: f32[1,128], index: 4, kind: input, shape index: {}]
  %s5 = inlined_call_operand.hbm [shape: f32[128,128], index: 5, kind: input, shape index: {}]
  %s6 = inlined_call_operand.vmem [shape: f32[1,128], index: 6, kind: input, shape index: {}]
  %s7 = inlined_call_operand.hbm [shape: f32[8,128], index: 7, kind: output, shape index: {}]
  %s8 = sld [smem:[#allocation0]]
  $region46: #{tpu_custom_call.1} parent=0
    _
  %s10 = ssub.s32 1, %s8
  %s11 = scalar_select 0, %s10, %s8
  $region1: #{tpu_custom_call.1} parent=0
    #allocation2 [shape = 'u8[16384]{0}', space=vmem, size = 0x4000, scoped, tag = 'input window, operand 3, single buffered']
    #allocation3 [shape = 's32[1]{0}', space=sflag, size = 0x4, scoped, tag = 'scoped memory for tpu_custom_call.1']
    #allocation4 [shape = 's32[1]{0}', space=sflag, size = 0x4, scoped, tag = 'scoped memory for tpu_custom_call.1']
    #allocation5 [shape = 'u8[65536]{0}', space=vmem, size = 0x10000, scoped, tag = 'input window, operand 5, single buffered']
    #allocation6 [shape = 's32[1]{0}', space=sflag, size = 0x4, scoped, tag = 'scoped memory for tpu_custom_call.1']
    #allocation7 [shape = 'u8[4096]{0}', space=vmem, size = 0x1000, scoped, tag = 'output window, operand 0, single buffered']
    %12 = vsyncpa [#allocation3], 0
    %13 = vsyncpa [#allocation6], 0
    %14 = vsyncpa [#allocation4], 0
    // Predicated region
    $region2: #{tpu_custom_call.1} parent=1 // pred_check
      _
    $region3: #{tpu_custom_call.1} parent=1 // pred_check_branch
      %16 = sbr.rel (0) target = $region5
    $region4: #{tpu_custom_call.1} parent=1 // pred_region
      _
    $region5: #{tpu_custom_call.1} parent=1 // pred_fallthru
      _
    // Predicated region
    $region6: #{tpu_custom_call.1} parent=1 // pred_check
      _
    $region7: #{tpu_custom_call.1} parent=1 // pred_check_branch
      %18 = sbr.rel (0) target = $region9
    $region8: #{tpu_custom_call.1} parent=1 // pred_region
      _
    $region9: #{tpu_custom_call.1} parent=1 // pred_fallthru
      _
    // Predicated region
    $region10: #{tpu_custom_call.1} parent=1 // pred_check
      _
    $region11: #{tpu_custom_call.1} parent=1 // pred_check_branch
      %20 = sbr.rel (0) target = $region13
    $region12: #{tpu_custom_call.1} parent=1 // pred_region
      _
    $region13: #{tpu_custom_call.1} parent=1 // pred_fallthru
      _
    // Predicated region
    $region14: #{tpu_custom_call.1} parent=1 // pred_check
      _
    $region15: #{tpu_custom_call.1} parent=1 // pred_check_branch
      %22 = sbr.rel (0) target = $region17
    $region16: #{tpu_custom_call.1} parent=1 // pred_region
      %s24 = ssub.s32 512, 512
      %25 = vsyncadd [#allocation3], %s24
      %s26 = sshll.u32 [#allocation2], 4
      %s27 = int_to_ptr.vmem [resolvable:$true] %s26
      %32 = dma.hbm_to_vmem [thread:$0]  %s3, 512, %s27, [#allocation3], 128, 128, 8
    $region17: #{tpu_custom_call.1} parent=1 // pred_fallthru
      _
    // Predicated region
    $region18: #{tpu_custom_call.1} parent=1 // pred_check
      _
    $region19: #{tpu_custom_call.1} parent=1 // pred_check_branch
      %34 = sbr.rel (0) target = $region21
    $region20: #{tpu_custom_call.1} parent=1 // pred_region
      _
    $region21: #{tpu_custom_call.1} parent=1 // pred_fallthru
      _
    // Predicated region
    $region22: #{tpu_custom_call.1} parent=1 // pred_check
      _
    $region23: #{tpu_custom_call.1} parent=1 // pred_check_branch
      %36 = sbr.rel (0) target = $region25
    $region24: #{tpu_custom_call.1} parent=1 // pred_region
      %s38 = ssub.s32 2048, 2048
      %39 = vsyncadd [#allocation6], %s38
      %s40 = sshll.u32 [#allocation5], 4
      %s41 = int_to_ptr.vmem [resolvable:$true] %s40
      %46 = dma.hbm_to_vmem [thread:$0]  %s5, 2048, %s41, [#allocation6], 128, 128, 8
    $region25: #{tpu_custom_call.1} parent=1 // pred_fallthru
      _
    // Predicated region
    $region26: #{tpu_custom_call.1} parent=1 // pred_check
      _
    $region27: #{tpu_custom_call.1} parent=1 // pred_check_branch
      %48 = sbr.rel (0) target = $region29
    $region28: #{tpu_custom_call.1} parent=1 // pred_region
      _
    $region29: #{tpu_custom_call.1} parent=1 // pred_fallthru
      _
    // Predicated region
    $region30: #{tpu_custom_call.1} parent=1 // pred_check
      _
    $region31: #{tpu_custom_call.1} parent=1 // pred_check_branch
      %50 = sbr.rel (0) target = $region33
    $region32: #{tpu_custom_call.1} parent=1 // pred_region
      %51 = dma.done [#allocation3], 512
    $region33: #{tpu_custom_call.1} parent=1 // pred_fallthru
      _
    // Predicated region
    $region34: #{tpu_custom_call.1} parent=1 // pred_check
      _
    $region35: #{tpu_custom_call.1} parent=1 // pred_check_branch
      %53 = sbr.rel (0) target = $region37
    $region36: #{tpu_custom_call.1} parent=1 // pred_region
      %54 = dma.done [#allocation6], 2048
    $region37: #{tpu_custom_call.1} parent=1 // pred_fallthru
      _
    %v55 = vld [vmem:[%s0] sm:$0xff]
    %v56 = vld [vmem:[%s1] sm:$0x1]
    %58 = vset.pattern.permute.xlu0 0
    %59 = vperm.xlu0 %58, %v55
    %v60 = vpop.permute.xlu0 %59
    %v63 = vlaneseq
    %v64 = vshrl.u32 %v63, 7
    %v65 = vsub.s32 0, %v64
    %v66 = vrot.slane %v56, %v65
    %v68 = vmul.f32 %v60, %v66
    %v69 = vld [vmem:[%s2] sm:$0x1]
    %v71 = vlaneseq
    %v72 = vshrl.u32 %v71, 7
    %v73 = vsub.s32 0, %v72
    %v74 = vrot.slane %v69, %v73
    %v76 = vadd.f32 %v68, %v74
    %v77 = vand.u32 2147483647, %v76
    %vm78 = vcmp.le.f32.partialorder %v77, 0.7853982
    %vm79 = vcmp.lt.s32.totalorder %v76, 0
    %v80 = vand.u32 %v76, 2139095040
    %v81 = vshrl.u32 %v80, 23
    %v82 = vsub.s32 %v81, 127
    %v83 = vand.u32 2147483647, %v76
    %v84 = vand.u32 %v83, 8388607
    %v85 = vor.u32 %v84, 8388608
    %v86 = vsub.s32 0, %v85
    %v87 = vadd.s32 %v82, 1
    %vm88 = vcmp.gt.s32.totalorder %v87, 0
    %v89 = vsel %vm88, %v87, 0
    %v90 = vshrl.u32 %v89, 5
    %v91 = vand.u32 %v89, 31
    %v92 = vsub.s32 32, %v91
    %v93 = vshrl.u32 683565275, %v92
    %v94 = vshll.u32 683565275, %v91
    %v95 = vshrl.u32 2475754826, %v92
    %v96 = vor.u32 %v94, %v95
    %v97 = vshll.u32 2475754826, %v91
    %v98 = vshrl.u32 2131351028, %v92
    %v99 = vor.u32 %v97, %v98
    %v100 = vshll.u32 2131351028, %v91
    %v101 = vshrl.u32 2102212464, %v92
    %v102 = vor.u32 %v100, %v101
    %v103 = vshll.u32 2102212464, %v91
    %v104 = vshrl.u32 920167782, %v92
    %v105 = vor.u32 %v103, %v104
    %v106 = vshll.u32 920167782, %v91
    %v107 = vshrl.u32 1326507024, %v92
    %v108 = vor.u32 %v106, %v107
    %vm109 = vcmp.lt.s32.totalorder %v90, 1
    %vm110 = vcmp.lt.s32.totalorder %v90, 2
    %vm111 = vcmp.lt.s32.totalorder %v90, 3
    %vm112 = vcmp.lt.s32.totalorder %v90, 4
    %v113 = vsel %vm109, %v93, %v96
    %v114 = vsel %vm112, %v102, 2102212464
    %v115 = vsel %vm111, %v99, %v114
    %v116 = vsel %vm110, %v113, %v115
    %v117 = vsel %vm109, %v96, %v99
    %v118 = vsel %vm112, %v105, 920167782
    %v119 = vsel %vm111, %v102, %v118
    %v120 = vsel %vm110, %v117, %v119
    %v121 = vsel %vm109, %v99, %v102
    %v122 = vsel %vm112, %v108, 1326507024
    %v123 = vsel %vm111, %v105, %v122
    %v124 = vsel %vm110, %v121, %v123
    %v125 = vshll.u32 %v85, 8
    %v126 = vmul.u32.u64.compose %v125, %v124
    %v127 = vextract.low.u32 %v126
    %v128 = vextract.high.u32 %v126
    %v129 = vmul.u32.u64.compose %v125, %v120
    %v130 = vextract.low.u32 %v129
    %v131 = vextract.high.u32 %v129
    %v132 = vmul.u32 %v125, %v116
    %v133 = vadd.s32 %v128, %v130
    %vm134 = vc.u32 %v128, %v130
    %v135 = vadd.s32 %v131, 1
    %v136 = vsel %vm134, %v135, %v131
    %v137 = vadd.s32 %v132, %v136
    %v138 = vadd.s32 %v137, 536870912
    %v139 = vshrl.u32 %v138, 30
    %v140 = vshll.u32 %v139, 30
    %v141 = vsub.s32 %v137, %v140
    %vm142 = vcmp.lt.s32.totalorder %v141, 0
    %v143 = vsub.s32 0, %v141
    %v144 = vsel %vm142, %v143, %v141
    %v145 = vclz %v144
    %v146 = vsub.s32 %v145, 2
    %vm147 = vcmp.gt.s32.totalorder 0, %v146
    %v148 = vsel %vm147, 0, %v146
    %v149 = vsub.s32 32, %v148
    %v150 = vshll.u32 %v141, %v148
    %v151 = vshrl.u32 %v133, %v149
    %v152 = vor.u32 %v150, %v151
    %v153 = vsub.s32 4294967266, %v148
    %v154 = vadd.s32 %v153, 127
    %v155 = vshll.u32 %v154, 23
    %v156 = vor.u32 4788187, %v155
    %v157 = vand.u32 2147483647, %v156
    %v159 = vcvt.s32.f32 %v152
    %v160 = vmul.f32 %v159, %v157
    %v161 = vxor.u32 %v160, 2147483648
    %v162 = vsel %vm79, %v161, %v160
    %v163 = vsub.s32 4, %v139
    %v164 = vsel %vm79, %v163, %v139
    %v165 = vsel %vm78, %v76, %v162
    %v166 = vsel %vm78, 0, %v164
    %v167 = vcosq.f32.pop %v165
    %v168 = vsinq.f32.pop %v165
    %vm169 = vweird.f32 %v76
    %v170 = vand.u32 %v166, 3
    %vm171 = vcmp.lt.s32.totalorder %v170, 2
    %vm172 = vcmp.eq.s32.totalorder %v170, 0
    %v173 = vxor.u32 %v168, 2147483648
    %v174 = vsel %vm172, %v167, %v173
    %vm175 = vcmp.eq.s32.totalorder %v170, 2
    %v176 = vxor.u32 %v167, 2147483648
    %v177 = vsel %vm175, %v176, %v168
    %v178 = vsel %vm171, %v174, %v177
    %v179 = vsel %vm169, nan, %v178
    %v180 = vld [vmem:[#allocation2] sm:$0xff]
    %v181 = vld [vmem:[#allocation2 + $0x8] sm:$0xff]
    %v182 = vld [vmem:[#allocation2 + $0x10] sm:$0xff]
    %v183 = vld [vmem:[#allocation2 + $0x18] sm:$0xff]
    %v184 = vld [vmem:[%s4] sm:$0x1]
    %v186 = vlaneseq
    %v187 = vshrl.u32 %v186, 7
    %v188 = vsub.s32 0, %v187
    %v189 = vrot.slane %v184, %v188
    %vm191 = vcmask 261120
    %v193 = vsel %vm191, %v179, 0
    %195 = vmatprep.subr.mxu0 0.0
    %196 = vmatpush1.msra.mxu0 0.0
    %197 = vmatprep.subr.mxu0 0.0
    %198 = vmatpush1.msra.mxu0 0.0
    %199 = vmatprep.subr.mxu0 0.0
    %200 = vmatpush1.msra.mxu0 0.0
    %201 = vmatprep.subr.mxu0 0.0
    %202 = vmatpush1.msra.mxu0 0.0
    %203 = vmatprep.subr.mxu0 0.0
    %204 = vmatpush1.msra.mxu0 0.0
    %205 = vmatprep.subr.mxu0 0.0
    %206 = vmatpush1.msra.mxu0 0.0
    %207 = vmatprep.subr.mxu0 0.0
    %208 = vmatpush1.msra.mxu0 0.0
    %209 = vmatprep.subr.mxu0 0.0
    %210 = vmatpush1.msra.mxu0 0.0
    %211 = vmatprep.subr.mxu0 0.0
    %212 = vmatpush1.msra.mxu0 0.0
    %213 = vmatprep.subr.mxu0 0.0
    %214 = vmatpush1.msra.mxu0 0.0
    %215 = vmatprep.subr.mxu0 0.0
    %216 = vmatpush1.msra.mxu0 0.0
    %217 = vmatprep.subr.mxu0 0.0
    %218 = vmatpush1.msra.mxu0 0.0
    %219 = vmatprep.subr.mxu0 0.0
    %220 = vmatpush1.msra.mxu0 %v183
    %221 = vmatprep.subr.mxu0 0.0
    %222 = vmatpush1.msra.mxu0 %v182
    %223 = vmatprep.subr.mxu0 0.0
    %224 = vmatpush1.msra.mxu0 %v181
    %225 = vmatprep.subr.mxu0 0.0
    %226 = vmatpush1.msra.mxu0 %v180
    %227 = vmatprep.subr.mxu0 0.0
    %228 = vmatpush2.msra.mxu0 0.0
    %229 = vmatprep.subr.mxu0 0.0
    %230 = vmatpush2.msra.mxu0 0.0
    %231 = vmatprep.subr.mxu0 0.0
    %232 = vmatpush2.msra.mxu0 0.0
    %233 = vmatprep.subr.mxu0 0.0
    %234 = vmatpush2.msra.mxu0 0.0
    %235 = vmatprep.subr.mxu0 0.0
    %236 = vmatpush2.msra.mxu0 0.0
    %237 = vmatprep.subr.mxu0 0.0
    %238 = vmatpush2.msra.mxu0 0.0
    %239 = vmatprep.subr.mxu0 0.0
    %240 = vmatpush2.msra.mxu0 0.0
    %241 = vmatprep.subr.mxu0 0.0
    %242 = vmatpush2.msra.mxu0 0.0
    %243 = vmatprep.subr.mxu0 0.0
    %244 = vmatpush2.msra.mxu0 0.0
    %245 = vmatprep.subr.mxu0 0.0
    %246 = vmatpush2.msra.mxu0 0.0
    %247 = vmatprep.subr.mxu0 0.0
    %248 = vmatpush2.msra.mxu0 0.0
    %249 = vmatprep.subr.mxu0 0.0
    %250 = vmatpush2.msra.mxu0 0.0
    %251 = vmatprep.subr.mxu0 0.0
    %252 = vmatpush2.msra.mxu0 0.0
    %253 = vmatprep.subr.mxu0 0.0
    %254 = vmatpush2.msra.mxu0 0.0
    %255 = vmatprep.subr.mxu0 0.0
    %256 = vmatpush2.msra.mxu0 0.0
    %257 = vmatprep.subr.mxu0 0.0
    %258 = vmatpush2.msra.mxu0 0.0
    %259 = vmatprep.mubr.f32.mxu0 0.0
    %260 = vmatmul.mubr.f32.gmra.mxu0 %v193
    %v261 = vpop.f32.mrf.mxu0
    %v262 = vadd.f32 %v189, %v261
    %v263 = vpop.f32.mrf.mxu0
    %264 = vdwg.mxu0
    %v265 = vxor.u32 %v262, 2147483648
    %v266 = vmul.f32 %v265, 1.442695
    %v267 = vpow.pop %v266
    %v268 = vadd.f32 %v267, 1.0
    %v269 = vrcp.pop %v268
    %v270 = vmul.f32 1.0, %v269
    %v271 = vmul.f32 %v262, %v270
    %v272 = vld [vmem:[#allocation5] sm:$0xff]
    %v273 = vld [vmem:[#allocation5 + $0x8] sm:$0xff]
    %v274 = vld [vmem:[#allocation5 + $0x10] sm:$0xff]
    %v275 = vld [vmem:[#allocation5 + $0x18] sm:$0xff]
    %v276 = vld [vmem:[#allocation5 + $0x20] sm:$0xff]
    %v277 = vld [vmem:[#allocation5 + $0x28] sm:$0xff]
    %v278 = vld [vmem:[#allocation5 + $0x30] sm:$0xff]
    %v279 = vld [vmem:[#allocation5 + $0x38] sm:$0xff]
    %v280 = vld [vmem:[#allocation5 + $0x40] sm:$0xff]
    %v281 = vld [vmem:[#allocation5 + $0x48] sm:$0xff]
    %v282 = vld [vmem:[#allocation5 + $0x50] sm:$0xff]
    %v283 = vld [vmem:[#allocation5 + $0x58] sm:$0xff]
    %v284 = vld [vmem:[#allocation5 + $0x60] sm:$0xff]
    %v285 = vld [vmem:[#allocation5 + $0x68] sm:$0xff]
    %v286 = vld [vmem:[#allocation5 + $0x70] sm:$0xff]
    %v287 = vld [vmem:[#allocation5 + $0x78] sm:$0xff]
    %v288 = vld [vmem:[%s6] sm:$0x1]
    %v290 = vlaneseq
    %v291 = vshrl.u32 %v290, 7
    %v292 = vsub.s32 0, %v291
    %v293 = vrot.slane %v288, %v292
    %295 = vmatprep.subr.mxu0 0.0
    %296 = vmatpush1.msra.mxu0 %v287
    %297 = vmatprep.subr.mxu0 0.0
    %298 = vmatpush1.msra.mxu0 %v286
    %299 = vmatprep.subr.mxu0 0.0
    %300 = vmatpush1.msra.mxu0 %v285
    %301 = vmatprep.subr.mxu0 0.0
    %302 = vmatpush1.msra.mxu0 %v284
    %303 = vmatprep.subr.mxu0 0.0
    %304 = vmatpush1.msra.mxu0 %v283
    %305 = vmatprep.subr.mxu0 0.0
    %306 = vmatpush1.msra.mxu0 %v282
    %307 = vmatprep.subr.mxu0 0.0
    %308 = vmatpush1.msra.mxu0 %v281
    %309 = vmatprep.subr.mxu0 0.0
    %310 = vmatpush1.msra.mxu0 %v280
    %311 = vmatprep.subr.mxu0 0.0
    %312 = vmatpush1.msra.mxu0 %v279
    %313 = vmatprep.subr.mxu0 0.0
    %314 = vmatpush1.msra.mxu0 %v278
    %315 = vmatprep.subr.mxu0 0.0
    %316 = vmatpush1.msra.mxu0 %v277
    %317 = vmatprep.subr.mxu0 0.0
    %318 = vmatpush1.msra.mxu0 %v276
    %319 = vmatprep.subr.mxu0 0.0
    %320 = vmatpush1.msra.mxu0 %v275
    %321 = vmatprep.subr.mxu0 0.0
    %322 = vmatpush1.msra.mxu0 %v274
    %323 = vmatprep.subr.mxu0 0.0
    %324 = vmatpush1.msra.mxu0 %v273
    %325 = vmatprep.subr.mxu0 0.0
    %326 = vmatpush1.msra.mxu0 %v272
    %327 = vmatprep.subr.mxu0 0.0
    %328 = vmatpush2.msra.mxu0 0.0
    %329 = vmatprep.subr.mxu0 0.0
    %330 = vmatpush2.msra.mxu0 0.0
    %331 = vmatprep.subr.mxu0 0.0
    %332 = vmatpush2.msra.mxu0 0.0
    %333 = vmatprep.subr.mxu0 0.0
    %334 = vmatpush2.msra.mxu0 0.0
    %335 = vmatprep.subr.mxu0 0.0
    %336 = vmatpush2.msra.mxu0 0.0
    %337 = vmatprep.subr.mxu0 0.0
    %338 = vmatpush2.msra.mxu0 0.0
    %339 = vmatprep.subr.mxu0 0.0
    %340 = vmatpush2.msra.mxu0 0.0
    %341 = vmatprep.subr.mxu0 0.0
    %342 = vmatpush2.msra.mxu0 0.0
    %343 = vmatprep.subr.mxu0 0.0
    %344 = vmatpush2.msra.mxu0 0.0
    %345 = vmatprep.subr.mxu0 0.0
    %346 = vmatpush2.msra.mxu0 0.0
    %347 = vmatprep.subr.mxu0 0.0
    %348 = vmatpush2.msra.mxu0 0.0
    %349 = vmatprep.subr.mxu0 0.0
    %350 = vmatpush2.msra.mxu0 0.0
    %351 = vmatprep.subr.mxu0 0.0
    %352 = vmatpush2.msra.mxu0 0.0
    %353 = vmatprep.subr.mxu0 0.0
    %354 = vmatpush2.msra.mxu0 0.0
    %355 = vmatprep.subr.mxu0 0.0
    %356 = vmatpush2.msra.mxu0 0.0
    %357 = vmatprep.subr.mxu0 0.0
    %358 = vmatpush2.msra.mxu0 0.0
    %359 = vmatprep.mubr.f32.mxu0 0.0
    %360 = vmatmul.mubr.f32.gmra.mxu0 %v271
    %v361 = vpop.f32.mrf.mxu0
    %v362 = vadd.f32 %v293, %v361
    %v363 = vpop.f32.mrf.mxu0
    %364 = vdwg.mxu0
    %365 = vst [vmem:[#allocation7] sm:$0xff] %v362
    // Predicated region
    $region38: #{tpu_custom_call.1} parent=1 // pred_check
      _
    $region39: #{tpu_custom_call.1} parent=1 // pred_check_branch
      %367 = sbr.rel (0) target = $region41
    $region40: #{tpu_custom_call.1} parent=1 // pred_region
      %s369 = ssub.s32 128, 128
      %370 = vsyncadd [#allocation4], %s369
      %s372 = sshll.u32 [#allocation7], 4
      %s373 = int_to_ptr.vmem [resolvable:$true] %s372
      %375 = dma.vmem_to_hbm [thread:$0]  %s373, 128, %s7, [#allocation4]
    $region41: #{tpu_custom_call.1} parent=1 // pred_fallthru
      _
    // Predicated region
    $region42: #{tpu_custom_call.1} parent=1 // pred_check
      _
    $region43: #{tpu_custom_call.1} parent=1 // pred_check_branch
      %377 = sbr.rel (0) target = $region45
    $region44: #{tpu_custom_call.1} parent=1 // pred_region
      %378 = dma.done [#allocation4], 128
    $region45: #{tpu_custom_call.1} parent=1 // pred_fallthru
      _
    %379 = vsyncpa [#allocation3], 1
    %380 = vsyncpa [#allocation6], 1
    %381 = vsyncpa [#allocation4], 1

</llo_original>
